<compile_context>
chip_gen: v7x
topology: tpu7x:2x2x1
jax: 0.10.0
libtpu: 0.0.40
codegen_flags: <defaults>
</compile_context>

<pallas_src>
import functools

import jax
import jax.numpy as jnp
from jax.experimental import pallas as pl
from jax.experimental.pallas import tpu as pltpu

TASK_A_CLASSES = ['Technology', 'Weather', 'Other']
TASK_B_TAGS = ['O', 'B-TECH', 'I-TECH', 'B-WEATHER', 'I-WEATHER']


def _round_up(x, m):
    return (x + m - 1) // m * m


def _multi_task_kernel(tok_ref, mask_ref, invd_ref,
                       wa1_ref, ba1_ref, wa2_ref, ba2_ref,
                       wb1_ref, bb1_ref, wb2_ref, bb2_ref,
                       a_logits_ref, b_logits_ref, sent_ref):
    Bt, S, E = tok_ref.shape
    Cb = b_logits_ref.shape[-1]
    mm_dtype = wa1_ref.dtype          # bf16 by default; f32 if requested

    tok = tok_ref[...]                # (Bt, S, E)  mm_dtype
    mask = mask_ref[...]              # (Bt, S)     f32, lane-dense
    inv_d = invd_ref[...]             # (Bt, 1)     f32 = 1 / max(sum(mask), 1)

    # ---- mean pooling (accumulate in f32; VPU math stays f32 for v5e) ----
    tok_f32 = tok.astype(jnp.float32)
    sent = jnp.sum(tok_f32 * mask[:, :, None], axis=1) * inv_d        # (Bt, E) f32
    sent_ref[...] = sent[:, None, :]

    # ---- Task A head on the pooled embedding: tiny (Bt,E)x(E,H) matmul ----
    ha = jnp.dot(sent.astype(mm_dtype), wa1_ref[...],
                 preferred_element_type=jnp.float32) + ba1_ref[...]   # (Bt, H)
    ha = jnp.maximum(ha, 0.0)         # Dropout = identity in eval mode
    a = jnp.dot(ha.astype(mm_dtype), wa2_ref[...],
                preferred_element_type=jnp.float32) + ba2_ref[...]    # (Bt, Ca)
    a_logits_ref[...] = a[:, None, :]

    # ---- Task B head per token: dominant (Bt*S, E) x (E, H) matmul ----
    # NOTE: E and H should be multiples of 128 at production (MiniLM E=384,
    # H=128) so this reshape and the MXU K dimension stay layout-free/full.
    hb = jnp.dot(tok.reshape(Bt * S, E), wb1_ref[...],
                 preferred_element_type=jnp.float32) + bb1_ref[...]   # (Bt*S, H) f32
    hb = jnp.maximum(hb, 0.0)
    b = jnp.dot(hb.astype(mm_dtype), wb2_ref[...],
                preferred_element_type=jnp.float32) + bb2_ref[...]    # (Bt*S, Cb)
    b_logits_ref[...] = b.reshape(Bt, S, Cb)


def _vmem_limit_bytes(block_b, S, E, H, Ca, Cb, mm_itemsize):
    """Rough double-buffered tile footprint -> scoped-VMEM limit (32..64 MiB)."""
    LANE, F32 = 128, 4
    tok   = 2 * block_b * S * _round_up(E, LANE) * mm_itemsize
    mask  = 2 * block_b * _round_up(S, LANE) * F32
    invd  = 2 * block_b * LANE * F32
    out_a = 2 * block_b * _round_up(Ca, LANE) * F32
    out_b = 2 * block_b * S * _round_up(Cb, LANE) * F32
    out_s = 2 * block_b * _round_up(E, LANE) * F32
    wts   = 2 * (2 * E * _round_up(H, LANE) * mm_itemsize
                 + 2 * H * LANE * mm_itemsize
                 + 2 * _round_up(H, LANE) * F32 + 2 * LANE * F32)
    inter = 2 * block_b * S * (_round_up(E, LANE) + _round_up(H, LANE)) * F32
    est = tok + mask + invd + out_a + out_b + out_s + wts + inter
    return int(min(64 * 2**20, max(32 * 2**20, 2 * est)))


@functools.partial(jax.jit, static_argnames=("block_b", "matmul_dtype"))
def multi_task_forward(token_embeddings, attention_mask, params,
                       *, block_b=None, matmul_dtype=jnp.bfloat16):
    """Mean pooling + Task A + Task B heads in one batch-tiled Pallas kernel.

    token_embeddings: (B, S, E) float32 (encoder last_hidden_state)
    attention_mask:   (B, S)    float32 (1.0 real tokens, 0.0 padding)
    """
    B, S, E = token_embeddings.shape
    H = params['wa1'].shape[1]
    Ca = params['wa2'].shape[1]
    Cb = params['wb2'].shape[1]
    mm_itemsize = jnp.dtype(matmul_dtype).itemsize

    # ---- batch-tile selection: multiple of 8, sized to ~16 MiB of token tile
    # (well inside v7x's 64 MiB VMEM), and >= 2 grid steps when B allows so the
    # ("parallel",) axis shards across both v7x TensorCores.
    if block_b is None:
        if B <= 8:
            block_b = B
        else:
            tok_row_bytes = S * E * mm_itemsize
            budget_rows = max(8, (16 * 2**20) // max(tok_row_bytes, 1))
            block_b = max(8, (min(budget_rows, B // 2) // 8) * 8)
    block_b = min(block_b, B)
    if block_b < B and block_b % 8:       # 2-D mask/inv_denom sublane constraint
        block_b = min(B, _round_up(block_b, 8))

    num_blocks = pl.cdiv(B, block_b)
    Bp = num_blocks * block_b

    # ---- wrapper-side prep ----
    tok = token_embeddings.astype(matmul_dtype)    # bf16 DMA halves the dominant HBM read
    mask = attention_mask.astype(jnp.float32)      # (B, S) lane-dense (no (B,S,1) 128x pad)
    inv_denom = 1.0 / jnp.maximum(jnp.sum(mask, axis=1, keepdims=True), 1.0)   # (B, 1)

    if Bp != B:   # pad batch to a multiple of the tile (clamped denom keeps pad rows finite)
        tok = jnp.pad(tok, ((0, Bp - B), (0, 0), (0, 0)))
        mask = jnp.pad(mask, ((0, Bp - B), (0, 0)))
        inv_denom = jnp.pad(inv_denom, ((0, Bp - B), (0, 0)), constant_values=1.0)

    wa1 = params['wa1'].astype(matmul_dtype)
    wa2 = params['wa2'].astype(matmul_dtype)
    wb1 = params['wb1'].astype(matmul_dtype)
    wb2 = params['wb2'].astype(matmul_dtype)
    ba1 = params['ba1'].astype(jnp.float32)
    ba2 = params['ba2'].astype(jnp.float32)
    bb1 = params['bb1'].astype(jnp.float32)
    bb2 = params['bb2'].astype(jnp.float32)

    tile3 = lambda s: pl.BlockSpec(s, lambda i: (i, 0, 0))
    tile2 = lambda s: pl.BlockSpec(s, lambda i: (i, 0))
    # TODO(synk): grid-invariant weights would ideally use pipeline_mode=pl.Buffered(1)
    # to skip double-buffering; footprint is a few hundred KiB so it is left default.
    full2 = lambda s: pl.BlockSpec(s, lambda i: (0, 0))

    a_p, b_p, sent_p = pl.pallas_call(
        _multi_task_kernel,
        grid=(num_blocks,),
        out_shape=(
            jax.ShapeDtypeStruct((Bp, 1, Ca), jnp.float32),
            jax.ShapeDtypeStruct((Bp, S, Cb), jnp.float32),   # unpadded: no 25x HBM write blowup
            jax.ShapeDtypeStruct((Bp, 1, E), jnp.float32),
        ),
        in_specs=[
            tile3((block_b, S, E)),          # token embeddings (mm_dtype)
            tile2((block_b, S)),             # attention mask, lane-dense
            tile2((block_b, 1)),             # 1 / clamp(sum(mask), 1)
            full2((E, H)), full2((1, H)),    # wa1, ba1
            full2((H, Ca)), full2((1, Ca)),  # wa2, ba2
            full2((E, H)), full2((1, H)),    # wb1, bb1
            full2((H, Cb)), full2((1, Cb)),  # wb2, bb2
        ],
        out_specs=(
            tile3((block_b, 1, Ca)),
            tile3((block_b, S, Cb)),
            tile3((block_b, 1, E)),
        ),
        compiler_params=pltpu.CompilerParams(
            dimension_semantics=("parallel",),
            vmem_limit_bytes=_vmem_limit_bytes(block_b, S, E, H, Ca, Cb, mm_itemsize)),
    )(tok, mask, inv_denom, wa1, ba1, wa2, ba2, wb1, bb1, wb2, bb2)

    return {
        'task_a_logits': a_p[:B, 0, :],
        'task_b_logits': b_p[:B],
        'token_embeddings': token_embeddings,
        'sentence_embedding': sent_p[:B, 0, :],
    }


def init_params(key, embedding_dim, hidden_dim, num_a, num_b):
    ks = jax.random.split(key, 8)
    w, b = 0.05, 0.1
    return {
        # Task A head: Linear(E, H), Linear(H, num_a)
        'wa1': w * jax.random.normal(ks[0], (embedding_dim, hidden_dim), jnp.float32),
        'ba1': b * jax.random.normal(ks[1], (1, hidden_dim), jnp.float32),
        'wa2': w * jax.random.normal(ks[2], (hidden_dim, num_a), jnp.float32),
        'ba2': b * jax.random.normal(ks[3], (1, num_a), jnp.float32),
        # Task B head: Linear(E, H), Linear(H, num_b)
        'wb1': w * jax.random.normal(ks[4], (embedding_dim, hidden_dim), jnp.float32),
        'bb1': b * jax.random.normal(ks[5], (1, hidden_dim), jnp.float32),
        'wb2': w * jax.random.normal(ks[6], (hidden_dim, num_b), jnp.float32),
        'bb2': b * jax.random.normal(ks[7], (1, num_b), jnp.float32),
    }


def reference_forward(token_embeddings, attention_mask, params):
    """Pure-JAX f32 reference mirroring the PyTorch forward (eval mode, mean pooling)."""
    sent = jnp.sum(token_embeddings * attention_mask[..., None], axis=1)
    sent = sent / jnp.maximum(jnp.sum(attention_mask, axis=1, keepdims=True), 1.0)
    ha = jnp.maximum(sent @ params['wa1'] + params['ba1'], 0.0)
    a_logits = ha @ params['wa2'] + params['ba2']
    hb = jnp.maximum(jnp.einsum('bse,eh->bsh', token_embeddings, params['wb1'])
                     + params['bb1'][None], 0.0)
    b_logits = jnp.einsum('bsh,hl->bsl', hb, params['wb2']) + params['bb2'][None]
    return a_logits, b_logits, sent


if __name__ == "__main__":
    # Small shapes: batch=16 (tiled 8 per grid step -> 2 parallel grid steps),
    # seq=8, embedding_dim=32, head hidden_dim=128 (module default).
    B, S, E, H = 16, 8, 32, 128
    Ca, Cb = len(TASK_A_CLASSES), len(TASK_B_TAGS)

    key = jax.random.PRNGKey(0)
    k_tok, k_params = jax.random.split(key)

    token_embeddings = jax.random.normal(k_tok, (B, S, E), jnp.float32)
    # Deterministic attention mask with varying numbers of padding tokens.
    attention_mask = jnp.array(
        [[1.0] * (S - (b % 4)) + [0.0] * (b % 4) for b in range(B)],
        dtype=jnp.float32)

    params = init_params(k_params, E, H, Ca, Cb)

    out = multi_task_forward(token_embeddings, attention_mask, params)
    jax.block_until_ready(out)

    ref_a, ref_b, ref_sent = reference_forward(token_embeddings, attention_mask, params)
    assert out['task_a_logits'].shape == (B, Ca)
    assert out['task_b_logits'].shape == (B, S, Cb)
    assert out['sentence_embedding'].shape == (B, E)
    # bf16 MXU operands / bf16 input DMA -> relaxed tolerances vs the f32 reference.
    assert jnp.allclose(out['task_a_logits'], ref_a, atol=3e-2, rtol=5e-2)
    assert jnp.allclose(out['task_b_logits'], ref_b, atol=3e-2, rtol=5e-2)
    assert jnp.allclose(out['sentence_embedding'], ref_sent, atol=1e-2, rtol=2e-2)

    print("KERNEL_OK")
</pallas_src>

<mosaic_0001>
module attributes {stable_mosaic.version = 11 : i64} {
  func.func @_multi_task_kernel(%arg0: i32, %arg1: memref<8x8x32xbf16, #tpu.memory_space<vmem>>, %arg2: memref<8x8xf32, #tpu.memory_space<vmem>>, %arg3: memref<8x1xf32, #tpu.memory_space<vmem>>, %arg4: memref<32x128xbf16, #tpu.memory_space<vmem>>, %arg5: memref<1x128xf32, #tpu.memory_space<vmem>>, %arg6: memref<128x3xbf16, #tpu.memory_space<vmem>>, %arg7: memref<1x3xf32, #tpu.memory_space<vmem>>, %arg8: memref<32x128xbf16, #tpu.memory_space<vmem>>, %arg9: memref<1x128xf32, #tpu.memory_space<vmem>>, %arg10: memref<128x5xbf16, #tpu.memory_space<vmem>>, %arg11: memref<1x5xf32, #tpu.memory_space<vmem>>, %arg12: memref<8x1x3xf32, #tpu.memory_space<vmem>>, %arg13: memref<8x8x5xf32, #tpu.memory_space<vmem>>, %arg14: memref<8x1x32xf32, #tpu.memory_space<vmem>>) attributes {dimension_semantics = [#tpu.dimension_semantics<parallel>], iteration_bounds = array<i64: 2>, scalar_prefetch = 0 : i64, scratch_operands = 0 : i64, tpu.core_type = #tpu.core_type<tc>, window_params = [{transform_indices = @transform_0, window_bounds = array<i64: 8, 8, 32>}, {transform_indices = @transform_1, window_bounds = array<i64: 8, 8>}, {transform_indices = @transform_2, window_bounds = array<i64: 8, 1>}, {pipeline_mode = #tpu.pipeline_mode<synchronous>, transform_indices = @transform_3, window_bounds = array<i64: 32, 128>}, {pipeline_mode = #tpu.pipeline_mode<synchronous>, transform_indices = @transform_4, window_bounds = array<i64: 1, 128>}, {pipeline_mode = #tpu.pipeline_mode<synchronous>, transform_indices = @transform_5, window_bounds = array<i64: 128, 3>}, {pipeline_mode = #tpu.pipeline_mode<synchronous>, transform_indices = @transform_6, window_bounds = array<i64: 1, 3>}, {pipeline_mode = #tpu.pipeline_mode<synchronous>, transform_indices = @transform_7, window_bounds = array<i64: 32, 128>}, {pipeline_mode = #tpu.pipeline_mode<synchronous>, transform_indices = @transform_8, window_bounds = array<i64: 1, 128>}, {pipeline_mode = #tpu.pipeline_mode<synchronous>, transform_indices = @transform_9, window_bounds = array<i64: 128, 5>}, {pipeline_mode = #tpu.pipeline_mode<synchronous>, transform_indices = @transform_10, window_bounds = array<i64: 1, 5>}, {transform_indices = @transform_11, window_bounds = array<i64: 8, 1, 3>}, {transform_indices = @transform_12, window_bounds = array<i64: 8, 8, 5>}, {transform_indices = @transform_13, window_bounds = array<i64: 8, 1, 32>}]} {
    %c0 = arith.constant 0 : index
    %c0_0 = arith.constant 0 : index
    %c0_1 = arith.constant 0 : index
    %0 = vector.load %arg1[%c0, %c0_0, %c0_1] : memref<8x8x32xbf16, #tpu.memory_space<vmem>>, vector<8x8x32xbf16>
    %c0_2 = arith.constant 0 : index
    %c0_3 = arith.constant 0 : index
    %1 = vector.load %arg2[%c0_2, %c0_3] : memref<8x8xf32, #tpu.memory_space<vmem>>, vector<8x8xf32>
    %c0_4 = arith.constant 0 : index
    %c0_5 = arith.constant 0 : index
    %2 = vector.load %arg3[%c0_4, %c0_5] : memref<8x1xf32, #tpu.memory_space<vmem>>, vector<8x1xf32>
    %3 = arith.extf %0 : vector<8x8x32xbf16> to vector<8x8x32xf32>
    %4 = vector.shape_cast %1 : vector<8x8xf32> to vector<8x8x1xf32>
    %5 = vector.broadcast %4 : vector<8x8x1xf32> to vector<8x8x32xf32>
    %6 = arith.mulf %3, %5 : vector<8x8x32xf32>
    %cst = arith.constant dense<0.000000e+00> : vector<8x32xf32>
    %7 = vector.multi_reduction <add>, %6, %cst [1] : vector<8x8x32xf32> to vector<8x32xf32>
    %8 = vector.broadcast %2 : vector<8x1xf32> to vector<8x32xf32>
    %9 = arith.mulf %7, %8 : vector<8x32xf32>
    %10 = vector.shape_cast %9 : vector<8x32xf32> to vector<8x1x32xf32>
    %c0_6 = arith.constant 0 : index
    %c0_7 = arith.constant 0 : index
    %c0_8 = arith.constant 0 : index
    %11 = vector.load %arg14[%c0_6, %c0_7, %c0_8] : memref<8x1x32xf32, #tpu.memory_space<vmem>>, vector<8x1x32xf32>
    tpu.vector_store %arg14[%c0_6, %c0_7, %c0_8], %10 {strides = array<i32>} : memref<8x1x32xf32, #tpu.memory_space<vmem>>, vector<8x1x32xf32>,
    %12 = arith.truncf %9 : vector<8x32xf32> to vector<8x32xbf16>
    %c0_9 = arith.constant 0 : index
    %c0_10 = arith.constant 0 : index
    %13 = vector.load %arg4[%c0_9, %c0_10] : memref<32x128xbf16, #tpu.memory_space<vmem>>, vector<32x128xbf16>
    %cst_11 = arith.constant dense<0.000000e+00> : vector<8x128xf32>
    %14 = tpu.matmul %12, %13, %cst_11 {dimension_numbers = #tpu.dot_dimension_numbers<[1], [0], [0], [1], [0, 0, 1, 1], [], []>} : vector<8x32xbf16>, vector<32x128xbf16>, vector<8x128xf32> -> vector<8x128xf32>
    %c0_12 = arith.constant 0 : index
    %c0_13 = arith.constant 0 : index
    %15 = vector.load %arg5[%c0_12, %c0_13] : memref<1x128xf32, #tpu.memory_space<vmem>>, vector<1x128xf32>
    %16 = vector.broadcast %15 : vector<1x128xf32> to vector<8x128xf32>
    %17 = arith.addf %14, %16 : vector<8x128xf32>
    %cst_14 = arith.constant 0.000000e+00 : f32
    %18 = vector.broadcast %cst_14 : f32 to vector<8x128xf32>
    %19 = arith.maximumf %17, %18 : vector<8x128xf32>
    %20 = arith.truncf %19 : vector<8x128xf32> to vector<8x128xbf16>
    %c0_15 = arith.constant 0 : index
    %c0_16 = arith.constant 0 : index
    %21 = vector.load %arg6[%c0_15, %c0_16] : memref<128x3xbf16, #tpu.memory_space<vmem>>, vector<128x3xbf16>
    %cst_17 = arith.constant dense<0.000000e+00> : vector<8x3xf32>
    %22 = tpu.matmul %20, %21, %cst_17 {dimension_numbers = #tpu.dot_dimension_numbers<[1], [0], [0], [1], [0, 0, 1, 1], [], []>} : vector<8x128xbf16>, vector<128x3xbf16>, vector<8x3xf32> -> vector<8x3xf32>
    %c0_18 = arith.constant 0 : index
    %c0_19 = arith.constant 0 : index
    %23 = vector.load %arg7[%c0_18, %c0_19] : memref<1x3xf32, #tpu.memory_space<vmem>>, vector<1x3xf32>
    %24 = vector.broadcast %23 : vector<1x3xf32> to vector<8x3xf32>
    %25 = arith.addf %22, %24 : vector<8x3xf32>
    %26 = vector.shape_cast %25 : vector<8x3xf32> to vector<8x1x3xf32>
    %c0_20 = arith.constant 0 : index
    %c0_21 = arith.constant 0 : index
    %c0_22 = arith.constant 0 : index
    %27 = vector.load %arg12[%c0_20, %c0_21, %c0_22] : memref<8x1x3xf32, #tpu.memory_space<vmem>>, vector<8x1x3xf32>
    tpu.vector_store %arg12[%c0_20, %c0_21, %c0_22], %26 {strides = array<i32>} : memref<8x1x3xf32, #tpu.memory_space<vmem>>, vector<8x1x3xf32>,
    %28 = vector.shape_cast %0 : vector<8x8x32xbf16> to vector<64x32xbf16>
    %c0_23 = arith.constant 0 : index
    %c0_24 = arith.constant 0 : index
    %29 = vector.load %arg8[%c0_23, %c0_24] : memref<32x128xbf16, #tpu.memory_space<vmem>>, vector<32x128xbf16>
    %cst_25 = arith.constant dense<0.000000e+00> : vector<64x128xf32>
    %30 = tpu.matmul %28, %29, %cst_25 {dimension_numbers = #tpu.dot_dimension_numbers<[1], [0], [0], [1], [0, 0, 1, 1], [], []>} : vector<64x32xbf16>, vector<32x128xbf16>, vector<64x128xf32> -> vector<64x128xf32>
    %c0_26 = arith.constant 0 : index
    %c0_27 = arith.constant 0 : index
    %31 = vector.load %arg9[%c0_26, %c0_27] : memref<1x128xf32, #tpu.memory_space<vmem>>, vector<1x128xf32>
    %32 = vector.broadcast %31 : vector<1x128xf32> to vector<64x128xf32>
    %33 = arith.addf %30, %32 : vector<64x128xf32>
    %cst_28 = arith.constant 0.000000e+00 : f32
    %34 = vector.broadcast %cst_28 : f32 to vector<64x128xf32>
    %35 = arith.maximumf %33, %34 : vector<64x128xf32>
    %36 = arith.truncf %35 : vector<64x128xf32> to vector<64x128xbf16>
    %c0_29 = arith.constant 0 : index
    %c0_30 = arith.constant 0 : index
    %37 = vector.load %arg10[%c0_29, %c0_30] : memref<128x5xbf16, #tpu.memory_space<vmem>>, vector<128x5xbf16>
    %cst_31 = arith.constant dense<0.000000e+00> : vector<64x5xf32>
    %38 = tpu.matmul %36, %37, %cst_31 {dimension_numbers = #tpu.dot_dimension_numbers<[1], [0], [0], [1], [0, 0, 1, 1], [], []>} : vector<64x128xbf16>, vector<128x5xbf16>, vector<64x5xf32> -> vector<64x5xf32>
    %c0_32 = arith.constant 0 : index
    %c0_33 = arith.constant 0 : index
    %39 = vector.load %arg11[%c0_32, %c0_33] : memref<1x5xf32, #tpu.memory_space<vmem>>, vector<1x5xf32>
    %40 = vector.broadcast %39 : vector<1x5xf32> to vector<64x5xf32>
    %41 = arith.addf %38, %40 : vector<64x5xf32>
    %42 = vector.shape_cast %41 : vector<64x5xf32> to vector<8x8x5xf32>
    %c0_34 = arith.constant 0 : index
    %c0_35 = arith.constant 0 : index
    %c0_36 = arith.constant 0 : index
    %43 = vector.load %arg13[%c0_34, %c0_35, %c0_36] : memref<8x8x5xf32, #tpu.memory_space<vmem>>, vector<8x8x5xf32>
    tpu.vector_store %arg13[%c0_34, %c0_35, %c0_36], %42 {strides = array<i32>} : memref<8x8x5xf32, #tpu.memory_space<vmem>>, vector<8x8x5xf32>,
    return
  }
  func.func @transform_0(%arg0: i32) -> (i32, i32, i32) {
    %c0_i32 = arith.constant 0 : i32
    %c0_i32_0 = arith.constant 0 : i32
    %c0_i32_1 = arith.constant 0 : i32
    return %arg0, %c0_i32, %c0_i32_0 : i32, i32, i32
  }
  func.func @transform_1(%arg0: i32) -> (i32, i32) {
    %c0_i32 = arith.constant 0 : i32
    %c0_i32_0 = arith.constant 0 : i32
    return %arg0, %c0_i32 : i32, i32
  }
  func.func @transform_2(%arg0: i32) -> (i32, i32) {
    %c0_i32 = arith.constant 0 : i32
    %c0_i32_0 = arith.constant 0 : i32
    return %arg0, %c0_i32 : i32, i32
  }
  func.func @transform_3(%arg0: i32) -> (i32, i32) {
    %c0_i32 = arith.constant 0 : i32
    %c0_i32_0 = arith.constant 0 : i32
    %c0_i32_1 = arith.constant 0 : i32
    return %c0_i32, %c0_i32_0 : i32, i32
  }
  func.func @transform_4(%arg0: i32) -> (i32, i32) {
    %c0_i32 = arith.constant 0 : i32
    %c0_i32_0 = arith.constant 0 : i32
    %c0_i32_1 = arith.constant 0 : i32
    return %c0_i32, %c0_i32_0 : i32, i32
  }
  func.func @transform_5(%arg0: i32) -> (i32, i32) {
    %c0_i32 = arith.constant 0 : i32
    %c0_i32_0 = arith.constant 0 : i32
    %c0_i32_1 = arith.constant 0 : i32
    return %c0_i32, %c0_i32_0 : i32, i32
  }
  func.func @transform_6(%arg0: i32) -> (i32, i32) {
    %c0_i32 = arith.constant 0 : i32
    %c0_i32_0 = arith.constant 0 : i32
    %c0_i32_1 = arith.constant 0 : i32
    return %c0_i32, %c0_i32_0 : i32, i32
  }
  func.func @transform_7(%arg0: i32) -> (i32, i32) {
    %c0_i32 = arith.constant 0 : i32
    %c0_i32_0 = arith.constant 0 : i32
    %c0_i32_1 = arith.constant 0 : i32
    return %c0_i32, %c0_i32_0 : i32, i32
  }
  func.func @transform_8(%arg0: i32) -> (i32, i32) {
    %c0_i32 = arith.constant 0 : i32
    %c0_i32_0 = arith.constant 0 : i32
    %c0_i32_1 = arith.constant 0 : i32
    return %c0_i32, %c0_i32_0 : i32, i32
  }
  func.func @transform_9(%arg0: i32) -> (i32, i32) {
    %c0_i32 = arith.constant 0 : i32
    %c0_i32_0 = arith.constant 0 : i32
    %c0_i32_1 = arith.constant 0 : i32
    return %c0_i32, %c0_i32_0 : i32, i32
  }
  func.func @transform_10(%arg0: i32) -> (i32, i32) {
    %c0_i32 = arith.constant 0 : i32
    %c0_i32_0 = arith.constant 0 : i32
    %c0_i32_1 = arith.constant 0 : i32
    return %c0_i32, %c0_i32_0 : i32, i32
  }
  func.func @transform_11(%arg0: i32) -> (i32, i32, i32) {
    %c0_i32 = arith.constant 0 : i32
    %c0_i32_0 = arith.constant 0 : i32
    %c0_i32_1 = arith.constant 0 : i32
    return %arg0, %c0_i32, %c0_i32_0 : i32, i32, i32
  }
  func.func @transform_12(%arg0: i32) -> (i32, i32, i32) {
    %c0_i32 = arith.constant 0 : i32
    %c0_i32_0 = arith.constant 0 : i32
    %c0_i32_1 = arith.constant 0 : i32
    return %arg0, %c0_i32, %c0_i32_0 : i32, i32, i32
  }
  func.func @transform_13(%arg0: i32) -> (i32, i32, i32) {
    %c0_i32 = arith.constant 0 : i32
    %c0_i32_0 = arith.constant 0 : i32
    %c0_i32_1 = arith.constant 0 : i32
    return %arg0, %c0_i32, %c0_i32_0 : i32, i32, i32
  }
}

</mosaic_0001>

<llo_original>
// kernel: multi_task_forward.1
$region0: #{multi_task_forward.1}
  #allocation0 [shape = 'u32[]', space=smem, size = 0x4, offset = 0x4, fixed_abs, tag = 'smem constant byte address 0x4 - core index']
  #allocation1 [shape = 'u32[144,128]{1,0:T(1,128)}', space=vmem, size = 0x12000, scoped, tag = 'internal scratch']
  %s0 = inlined_call_operand.vmem [shape: bf16[16,8,32], index: 0, kind: input, shape index: {}]
  %s1 = inlined_call_operand.vmem [shape: f32[16,8], index: 1, kind: input, shape index: {}]
  %s2 = inlined_call_operand.vmem [shape: f32[16,1], index: 2, kind: input, shape index: {}]
  %s3 = inlined_call_operand.vmem [shape: bf16[32,128], index: 3, kind: input, shape index: {}]
  %s4 = inlined_call_operand.vmem [shape: f32[1,128], index: 4, kind: input, shape index: {}]
  %s5 = inlined_call_operand.vmem [shape: bf16[128,3], index: 5, kind: input, shape index: {}]
  %s6 = inlined_call_operand.vmem [shape: f32[1,3], index: 6, kind: input, shape index: {}]
  %s7 = inlined_call_operand.vmem [shape: bf16[32,128], index: 7, kind: input, shape index: {}]
  %s8 = inlined_call_operand.vmem [shape: f32[1,128], index: 8, kind: input, shape index: {}]
  %s9 = inlined_call_operand.vmem [shape: bf16[128,5], index: 9, kind: input, shape index: {}]
  %s10 = inlined_call_operand.vmem [shape: f32[1,5], index: 10, kind: input, shape index: {}]
  %s11 = inlined_call_operand.vmem [shape: f32[16,1,3], index: 11, kind: output, shape index: {0}]
  %s12 = inlined_call_operand.vmem [shape: f32[16,8,5], index: 12, kind: output, shape index: {1}]
  %s13 = inlined_call_operand.hbm [shape: f32[16,1,32], index: 13, kind: output, shape index: {2}]
  %14 = xla_tuple %s11, %s12, %s13
  %s15 = sld [smem:[#allocation0]]
  $region93: #{multi_task_forward.1} parent=0
    _
  %s17 = ssub.s32 1, %s15
  %s18 = scalar_select 0, %s17, %s15
  $region1: #{multi_task_forward.1} parent=0
    #allocation2 [shape = 'u8[8192]{0}', space=vmem, size = 0x2000, scoped, tag = 'output window, operand 2']
    #allocation3 [shape = 's32[2]{0}', space=sflag, size = 0x8, scoped, tag = 'scoped memory for multi_task_forward.1']
    %19 = vsyncpa [#allocation3], 0
    %s20 = scalar_lea.sflag [#allocation3], 1
    %21 = vsyncpa %s20, 0
    loop: start=0, step=1, limit=4
    $region2: #{multi_task_forward.1} parent=1 // loop_pre_header
      _
    $region3: #{multi_task_forward.1} parent=1 // loop_header
      %s23 = sphi 0, %s27
      %p24 = scmp.ge.s32.totalorder %s23, 4
      %s33 = sphi 0, %s35
      %s36 = sphi 0, %s33
      %s37 = sphi 0, %s36
      %s53 = sphi 0, %s37
      %s59 = sphi 0, %s61
      %s62 = sphi 0, %s59
      %s63 = sphi 0, %s62
      %s79 = sphi 0, %s63
      %s85 = sphi 0, %s87
      %s88 = sphi 0, %s85
      %s89 = sphi 0, %s88
      %s105 = sphi 0, %s89
      %s109 = sphi 0, %s109
      %s111 = sphi 0, %s109
      %s112 = sphi 0, %s111
      %s126 = sphi 0, %s112
      %s130 = sphi 0, %s130
      %s132 = sphi 0, %s130
      %s133 = sphi 0, %s132
      %s147 = sphi 0, %s133
      %s151 = sphi 0, %s151
      %s153 = sphi 0, %s151
      %s154 = sphi 0, %s153
      %s168 = sphi 0, %s154
      %s172 = sphi 0, %s172
      %s174 = sphi 0, %s172
      %s175 = sphi 0, %s174
      %s189 = sphi 0, %s175
      %s193 = sphi 0, %s193
      %s195 = sphi 0, %s193
      %s196 = sphi 0, %s195
      %s210 = sphi 0, %s196
      %s214 = sphi 0, %s214
      %s216 = sphi 0, %s214
      %s217 = sphi 0, %s216
      %s231 = sphi 0, %s217
      %s235 = sphi 0, %s235
      %s237 = sphi 0, %s235
      %s238 = sphi 0, %s237
      %s252 = sphi 0, %s238
      %s256 = sphi 0, %s256
      %s258 = sphi 0, %s256
      %s259 = sphi 0, %s258
      %s273 = sphi 0, %s259
      %s279 = sphi 0, %s281
      %s282 = sphi 0, %s279
      %s283 = sphi 0, %s282
      %s299 = sphi 0, %s283
      %s305 = sphi 0, %s307
      %s308 = sphi 0, %s305
      %s309 = sphi 0, %s308
      %s325 = sphi 0, %s309
      %s331 = sphi 0, %s333
      %s334 = sphi 0, %s331
      %s335 = sphi 0, %s334
      %s351 = sphi 0, %s335
    $region4: #{multi_task_forward.1} parent=1 // loop_header_branch
      %26 = sbr.rel (%p24) target = $region8
    $region5: #{multi_task_forward.1} parent=1 // loop_body
      %s28 = ssub.s32 %s23, 1
      %s29 = ssub.s32 %s23, 2
      %s30 = sadd.s32 %s23, 1
      %s31 = ssub.s32 %s23, %s30
      %p32 = scmp.eq.s32.totalorder %s31, 0
      %s34 = sadd.s32 %s33, 1
      %s35 = scalar_select %p32, %s33, %s34
      %p38 = pneg %p32
      %p39 = scmp.eq.s32.totalorder %s23, 1
      %p40 = por %p38, %p39
      %p41 = scmp.ne.s32.totalorder %s33, %s36
      %p42 = scmp.eq.s32.totalorder %s23, 0
      %p43 = por %p41, %p42
      %p44 = scmp.ne.s32.totalorder %s33, %s36
      %p45 = scmp.eq.s32.totalorder %s28, 1
      %p46 = por %p44, %p45
      %p47 = scmp.ne.s32.totalorder %s36, %s37
      %p48 = scmp.eq.s32.totalorder %s28, 0
      %p49 = por %p47, %p48
      %p50 = scmp.ne.s32.totalorder %s36, %s37
      %p51 = scmp.eq.s32.totalorder %s29, 1
      %p52 = por %p50, %p51
      %p54 = scmp.ne.s32.totalorder %s37, %s53
      %p55 = scmp.eq.s32.totalorder %s29, 0
      %p56 = por %p54, %p55
      %s57 = ssub.s32 %s23, %s30
      %p58 = scmp.eq.s32.totalorder %s57, 0
      %s60 = sadd.s32 %s59, 1
      %s61 = scalar_select %p58, %s59, %s60
      %p64 = pneg %p58
      %p65 = scmp.eq.s32.totalorder %s23, 1
      %p66 = por %p64, %p65
      %p67 = scmp.ne.s32.totalorder %s59, %s62
      %p68 = scmp.eq.s32.totalorder %s23, 0
      %p69 = por %p67, %p68
      %p70 = scmp.ne.s32.totalorder %s59, %s62
      %p71 = scmp.eq.s32.totalorder %s28, 1
      %p72 = por %p70, %p71
      %p73 = scmp.ne.s32.totalorder %s62, %s63
      %p74 = scmp.eq.s32.totalorder %s28, 0
      %p75 = por %p73, %p74
      %p76 = scmp.ne.s32.totalorder %s62, %s63
      %p77 = scmp.eq.s32.totalorder %s29, 1
      %p78 = por %p76, %p77
      %p80 = scmp.ne.s32.totalorder %s63, %s79
      %p81 = scmp.eq.s32.totalorder %s29, 0
      %p82 = por %p80, %p81
      %s83 = ssub.s32 %s23, %s30
      %p84 = scmp.eq.s32.totalorder %s83, 0
      %s86 = sadd.s32 %s85, 1
      %s87 = scalar_select %p84, %s85, %s86
      %p90 = pneg %p84
      %p91 = scmp.eq.s32.totalorder %s23, 1
      %p92 = por %p90, %p91
      %p93 = scmp.ne.s32.totalorder %s85, %s88
      %p94 = scmp.eq.s32.totalorder %s23, 0
      %p95 = por %p93, %p94
      %p96 = scmp.ne.s32.totalorder %s85, %s88
      %p97 = scmp.eq.s32.totalorder %s28, 1
      %p98 = por %p96, %p97
      %p99 = scmp.ne.s32.totalorder %s88, %s89
      %p100 = scmp.eq.s32.totalorder %s28, 0
      %p101 = por %p99, %p100
      %p102 = scmp.ne.s32.totalorder %s88, %s89
      %p103 = scmp.eq.s32.totalorder %s29, 1
      %p104 = por %p102, %p103
      %p106 = scmp.ne.s32.totalorder %s89, %s105
      %p107 = scmp.eq.s32.totalorder %s29, 0
      %p108 = por %p106, %p107
      %s110 = sadd.s32 %s109, 1
      %p113 = scmp.eq.s32.totalorder %s23, 1
      %p114 = scmp.ne.s32.totalorder %s109, %s111
      %p115 = scmp.eq.s32.totalorder %s23, 0
      %p116 = por %p114, %p115
      %p117 = scmp.ne.s32.totalorder %s109, %s111
      %p118 = scmp.eq.s32.totalorder %s28, 1
      %p119 = por %p117, %p118
      %p120 = scmp.ne.s32.totalorder %s111, %s112
      %p121 = scmp.eq.s32.totalorder %s28, 0
      %p122 = por %p120, %p121
      %p123 = scmp.ne.s32.totalorder %s111, %s112
      %p124 = scmp.eq.s32.totalorder %s29, 1
      %p125 = por %p123, %p124
      %p127 = scmp.ne.s32.totalorder %s112, %s126
      %p128 = scmp.eq.s32.totalorder %s29, 0
      %p129 = por %p127, %p128
      %s131 = sadd.s32 %s130, 1
      %p134 = scmp.eq.s32.totalorder %s23, 1
      %p135 = scmp.ne.s32.totalorder %s130, %s132
      %p136 = scmp.eq.s32.totalorder %s23, 0
      %p137 = por %p135, %p136
      %p138 = scmp.ne.s32.totalorder %s130, %s132
      %p139 = scmp.eq.s32.totalorder %s28, 1
      %p140 = por %p138, %p139
      %p141 = scmp.ne.s32.totalorder %s132, %s133
      %p142 = scmp.eq.s32.totalorder %s28, 0
      %p143 = por %p141, %p142
      %p144 = scmp.ne.s32.totalorder %s132, %s133
      %p145 = scmp.eq.s32.totalorder %s29, 1
      %p146 = por %p144, %p145
      %p148 = scmp.ne.s32.totalorder %s133, %s147
      %p149 = scmp.eq.s32.totalorder %s29, 0
      %p150 = por %p148, %p149
      %s152 = sadd.s32 %s151, 1
      %p155 = scmp.eq.s32.totalorder %s23, 1
      %p156 = scmp.ne.s32.totalorder %s151, %s153
      %p157 = scmp.eq.s32.totalorder %s23, 0
      %p158 = por %p156, %p157
      %p159 = scmp.ne.s32.totalorder %s151, %s153
      %p160 = scmp.eq.s32.totalorder %s28, 1
      %p161 = por %p159, %p160
      %p162 = scmp.ne.s32.totalorder %s153, %s154
      %p163 = scmp.eq.s32.totalorder %s28, 0
      %p164 = por %p162, %p163
      %p165 = scmp.ne.s32.totalorder %s153, %s154
      %p166 = scmp.eq.s32.totalorder %s29, 1
      %p167 = por %p165, %p166
      %p169 = scmp.ne.s32.totalorder %s154, %s168
      %p170 = scmp.eq.s32.totalorder %s29, 0
      %p171 = por %p169, %p170
      %s173 = sadd.s32 %s172, 1
      %p176 = scmp.eq.s32.totalorder %s23, 1
      %p177 = scmp.ne.s32.totalorder %s172, %s174
      %p178 = scmp.eq.s32.totalorder %s23, 0
      %p179 = por %p177, %p178
      %p180 = scmp.ne.s32.totalorder %s172, %s174
      %p181 = scmp.eq.s32.totalorder %s28, 1
      %p182 = por %p180, %p181
      %p183 = scmp.ne.s32.totalorder %s174, %s175
      %p184 = scmp.eq.s32.totalorder %s28, 0
      %p185 = por %p183, %p184
      %p186 = scmp.ne.s32.totalorder %s174, %s175
      %p187 = scmp.eq.s32.totalorder %s29, 1
      %p188 = por %p186, %p187
      %p190 = scmp.ne.s32.totalorder %s175, %s189
      %p191 = scmp.eq.s32.totalorder %s29, 0
      %p192 = por %p190, %p191
      %s194 = sadd.s32 %s193, 1
      %p197 = scmp.eq.s32.totalorder %s23, 1
      %p198 = scmp.ne.s32.totalorder %s193, %s195
      %p199 = scmp.eq.s32.totalorder %s23, 0
      %p200 = por %p198, %p199
      %p201 = scmp.ne.s32.totalorder %s193, %s195
      %p202 = scmp.eq.s32.totalorder %s28, 1
      %p203 = por %p201, %p202
      %p204 = scmp.ne.s32.totalorder %s195, %s196
      %p205 = scmp.eq.s32.totalorder %s28, 0
      %p206 = por %p204, %p205
      %p207 = scmp.ne.s32.totalorder %s195, %s196
      %p208 = scmp.eq.s32.totalorder %s29, 1
      %p209 = por %p207, %p208
      %p211 = scmp.ne.s32.totalorder %s196, %s210
      %p212 = scmp.eq.s32.totalorder %s29, 0
      %p213 = por %p211, %p212
      %s215 = sadd.s32 %s214, 1
      %p218 = scmp.eq.s32.totalorder %s23, 1
      %p219 = scmp.ne.s32.totalorder %s214, %s216
      %p220 = scmp.eq.s32.totalorder %s23, 0
      %p221 = por %p219, %p220
      %p222 = scmp.ne.s32.totalorder %s214, %s216
      %p223 = scmp.eq.s32.totalorder %s28, 1
      %p224 = por %p222, %p223
      %p225 = scmp.ne.s32.totalorder %s216, %s217
      %p226 = scmp.eq.s32.totalorder %s28, 0
      %p227 = por %p225, %p226
      %p228 = scmp.ne.s32.totalorder %s216, %s217
      %p229 = scmp.eq.s32.totalorder %s29, 1
      %p230 = por %p228, %p229
      %p232 = scmp.ne.s32.totalorder %s217, %s231
      %p233 = scmp.eq.s32.totalorder %s29, 0
      %p234 = por %p232, %p233
      %s236 = sadd.s32 %s235, 1
      %p239 = scmp.eq.s32.totalorder %s23, 1
      %p240 = scmp.ne.s32.totalorder %s235, %s237
      %p241 = scmp.eq.s32.totalorder %s23, 0
      %p242 = por %p240, %p241
      %p243 = scmp.ne.s32.totalorder %s235, %s237
      %p244 = scmp.eq.s32.totalorder %s28, 1
      %p245 = por %p243, %p244
      %p246 = scmp.ne.s32.totalorder %s237, %s238
      %p247 = scmp.eq.s32.totalorder %s28, 0
      %p248 = por %p246, %p247
      %p249 = scmp.ne.s32.totalorder %s237, %s238
      %p250 = scmp.eq.s32.totalorder %s29, 1
      %p251 = por %p249, %p250
      %p253 = scmp.ne.s32.totalorder %s238, %s252
      %p254 = scmp.eq.s32.totalorder %s29, 0
      %p255 = por %p253, %p254
      %s257 = sadd.s32 %s256, 1
      %p260 = scmp.eq.s32.totalorder %s23, 1
      %p261 = scmp.ne.s32.totalorder %s256, %s258
      %p262 = scmp.eq.s32.totalorder %s23, 0
      %p263 = por %p261, %p262
      %p264 = scmp.ne.s32.totalorder %s256, %s258
      %p265 = scmp.eq.s32.totalorder %s28, 1
      %p266 = por %p264, %p265
      %p267 = scmp.ne.s32.totalorder %s258, %s259
      %p268 = scmp.eq.s32.totalorder %s28, 0
      %p269 = por %p267, %p268
      %p270 = scmp.ne.s32.totalorder %s258, %s259
      %p271 = scmp.eq.s32.totalorder %s29, 1
      %p272 = por %p270, %p271
      %p274 = scmp.ne.s32.totalorder %s259, %s273
      %p275 = scmp.eq.s32.totalorder %s29, 0
      %p276 = por %p274, %p275
      %s277 = ssub.s32 %s23, %s30
      %p278 = scmp.eq.s32.totalorder %s277, 0
      %s280 = sadd.s32 %s279, 1
      %s281 = scalar_select %p278, %s279, %s280
      %p284 = pneg %p278
      %p285 = scmp.eq.s32.totalorder %s23, 1
      %p286 = por %p284, %p285
      %p287 = scmp.ne.s32.totalorder %s279, %s282
      %p288 = scmp.eq.s32.totalorder %s23, 0
      %p289 = por %p287, %p288
      %p290 = scmp.ne.s32.totalorder %s279, %s282
      %p291 = scmp.eq.s32.totalorder %s28, 1
      %p292 = por %p290, %p291
      %p293 = scmp.ne.s32.totalorder %s282, %s283
      %p294 = scmp.eq.s32.totalorder %s28, 0
      %p295 = por %p293, %p294
      %p296 = scmp.ne.s32.totalorder %s282, %s283
      %p297 = scmp.eq.s32.totalorder %s29, 1
      %p298 = por %p296, %p297
      %p300 = scmp.ne.s32.totalorder %s283, %s299
      %p301 = scmp.eq.s32.totalorder %s29, 0
      %p302 = por %p300, %p301
      %s303 = ssub.s32 %s23, %s30
      %p304 = scmp.eq.s32.totalorder %s303, 0
      %s306 = sadd.s32 %s305, 1
      %s307 = scalar_select %p304, %s305, %s306
      %p310 = pneg %p304
      %p311 = scmp.eq.s32.totalorder %s23, 1
      %p312 = por %p310, %p311
      %p313 = scmp.ne.s32.totalorder %s305, %s308
      %p314 = scmp.eq.s32.totalorder %s23, 0
      %p315 = por %p313, %p314
      %p316 = scmp.ne.s32.totalorder %s305, %s308
      %p317 = scmp.eq.s32.totalorder %s28, 1
      %p318 = por %p316, %p317
      %p319 = scmp.ne.s32.totalorder %s308, %s309
      %p320 = scmp.eq.s32.totalorder %s28, 0
      %p321 = por %p319, %p320
      %p322 = scmp.ne.s32.totalorder %s308, %s309
      %p323 = scmp.eq.s32.totalorder %s29, 1
      %p324 = por %p322, %p323
      %p326 = scmp.ne.s32.totalorder %s309, %s325
      %p327 = scmp.eq.s32.totalorder %s29, 0
      %p328 = por %p326, %p327
      %s329 = ssub.s32 %s23, %s30
      %p330 = scmp.eq.s32.totalorder %s329, 0
      %s332 = sadd.s32 %s331, 1
      %s333 = scalar_select %p330, %s331, %s332
      %p336 = pneg %p330
      %p337 = scmp.eq.s32.totalorder %s23, 1
      %p338 = por %p336, %p337
      %p339 = scmp.ne.s32.totalorder %s331, %s334
      %p340 = scmp.eq.s32.totalorder %s23, 0
      %p341 = por %p339, %p340
      %p342 = scmp.ne.s32.totalorder %s331, %s334
      %p343 = scmp.eq.s32.totalorder %s28, 1
      %p344 = por %p342, %p343
      %p345 = scmp.ne.s32.totalorder %s334, %s335
      %p346 = scmp.eq.s32.totalorder %s28, 0
      %p347 = por %p345, %p346
      %p348 = scmp.ne.s32.totalorder %s334, %s335
      %p349 = scmp.eq.s32.totalorder %s29, 1
      %p350 = por %p348, %p349
      %p352 = scmp.ne.s32.totalorder %s335, %s351
      %p353 = scmp.eq.s32.totalorder %s29, 0
      %p354 = por %p352, %p353
      %p355 = scmp.le.s32.totalorder 1, %s23
      %p356 = scmp.lt.s32.totalorder %s23, 3
      %p357 = pnand %p355, %p356
      %p358 = pneg %p357
      // Predicated region
      $region9: #{multi_task_forward.1} parent=5 // pred_check
        _
      $region10: #{multi_task_forward.1} parent=5 // pred_check_branch
        %360 = sbr.rel (%p357) target = $region12
      $region11: #{multi_task_forward.1} parent=5 // pred_region
        %s361 = ssub.s32 %s23, 1
        // Predicated region
        $region13: #{multi_task_forward.1} parent=11 // pred_check
          %p362 = pneg %p122
        $region14: #{multi_task_forward.1} parent=11 // pred_check_branch
          %364 = sbr.rel (%p362) target = $region16
        $region15: #{multi_task_forward.1} parent=11 // pred_region
          _
        $region16: #{multi_task_forward.1} parent=11 // pred_fallthru
          _
        // Predicated region
        $region17: #{multi_task_forward.1} parent=11 // pred_check
          %p365 = pneg %p143
        $region18: #{multi_task_forward.1} parent=11 // pred_check_branch
          %367 = sbr.rel (%p365) target = $region20
        $region19: #{multi_task_forward.1} parent=11 // pred_region
          _
        $region20: #{multi_task_forward.1} parent=11 // pred_fallthru
          _
        // Predicated region
        $region21: #{multi_task_forward.1} parent=11 // pred_check
          %p368 = pneg %p164
        $region22: #{multi_task_forward.1} parent=11 // pred_check_branch
          %370 = sbr.rel (%p368) target = $region24
        $region23: #{multi_task_forward.1} parent=11 // pred_region
          _
        $region24: #{multi_task_forward.1} parent=11 // pred_fallthru
          _
        // Predicated region
        $region25: #{multi_task_forward.1} parent=11 // pred_check
          %p371 = pneg %p185
        $region26: #{multi_task_forward.1} parent=11 // pred_check_branch
          %373 = sbr.rel (%p371) target = $region28
        $region27: #{multi_task_forward.1} parent=11 // pred_region
          _
        $region28: #{multi_task_forward.1} parent=11 // pred_fallthru
          _
        // Predicated region
        $region29: #{multi_task_forward.1} parent=11 // pred_check
          %p374 = pneg %p206
        $region30: #{multi_task_forward.1} parent=11 // pred_check_branch
          %376 = sbr.rel (%p374) target = $region32
        $region31: #{multi_task_forward.1} parent=11 // pred_region
          _
        $region32: #{multi_task_forward.1} parent=11 // pred_fallthru
          _
        // Predicated region
        $region33: #{multi_task_forward.1} parent=11 // pred_check
          %p377 = pneg %p227
        $region34: #{multi_task_forward.1} parent=11 // pred_check_branch
          %379 = sbr.rel (%p377) target = $region36
        $region35: #{multi_task_forward.1} parent=11 // pred_region
          _
        $region36: #{multi_task_forward.1} parent=11 // pred_fallthru
          _
        // Predicated region
        $region37: #{multi_task_forward.1} parent=11 // pred_check
          %p380 = pneg %p248
        $region38: #{multi_task_forward.1} parent=11 // pred_check_branch
          %382 = sbr.rel (%p380) target = $region40
        $region39: #{multi_task_forward.1} parent=11 // pred_region
          _
        $region40: #{multi_task_forward.1} parent=11 // pred_fallthru
          _
        // Predicated region
        $region41: #{multi_task_forward.1} parent=11 // pred_check
          %p383 = pneg %p269
        $region42: #{multi_task_forward.1} parent=11 // pred_check_branch
          %385 = sbr.rel (%p383) target = $region44
        $region43: #{multi_task_forward.1} parent=11 // pred_region
          _
        $region44: #{multi_task_forward.1} parent=11 // pred_fallthru
          _
      $region12: #{multi_task_forward.1} parent=5 // pred_fallthru
        _
      %p386 = scmp.lt.s32.totalorder %s23, 2
      // Predicated region
      $region45: #{multi_task_forward.1} parent=5 // pred_check
        %p387 = pneg %p386
      $region46: #{multi_task_forward.1} parent=5 // pred_check_branch
        %389 = sbr.rel (%p387) target = $region48
      $region47: #{multi_task_forward.1} parent=5 // pred_region
        // Predicated region
        $region49: #{multi_task_forward.1} parent=47 // pred_check
          %p390 = pneg %p43
        $region50: #{multi_task_forward.1} parent=47 // pred_check_branch
          %392 = sbr.rel (%p390) target = $region52
        $region51: #{multi_task_forward.1} parent=47 // pred_region
          %s393 = smul.u32 8, %s23
          %p394 = scmp.lt.s32.totalorder %s393, 15
          %s395 = scalar_select %p394, %s393, 15
          %s396 = smul.addr %s395, 4
          %s397 = scalar_lea.vmem %s0, %s396
          %s398 = smul.u32 8, %s23
        $region52: #{multi_task_forward.1} parent=47 // pred_fallthru
          _
        // Predicated region
        $region53: #{multi_task_forward.1} parent=47 // pred_check
          %p399 = pneg %p69
        $region54: #{multi_task_forward.1} parent=47 // pred_check_branch
          %401 = sbr.rel (%p399) target = $region56
        $region55: #{multi_task_forward.1} parent=47 // pred_region
          %p402 = scmp.lt.s32.totalorder %s23, 1
          %s403 = scalar_select %p402, %s23, 1
          %s404 = smul.addr %s403, 8
          %s405 = scalar_lea.vmem %s1, %s404
        $region56: #{multi_task_forward.1} parent=47 // pred_fallthru
          _
        // Predicated region
        $region57: #{multi_task_forward.1} parent=47 // pred_check
          %p406 = pneg %p95
        $region58: #{multi_task_forward.1} parent=47 // pred_check_branch
          %408 = sbr.rel (%p406) target = $region60
        $region59: #{multi_task_forward.1} parent=47 // pred_region
          %p409 = scmp.lt.s32.totalorder %s23, 1
          %s410 = scalar_select %p409, %s23, 1
          %s411 = smul.addr %s410, 8
          %s412 = scalar_lea.vmem %s2, %s411
        $region60: #{multi_task_forward.1} parent=47 // pred_fallthru
          _
      $region48: #{multi_task_forward.1} parent=5 // pred_fallthru
        _
      %p413 = scmp.le.s32.totalorder 1, %s23
      %p414 = scmp.lt.s32.totalorder %s23, 3
      %p415 = pnand %p413, %p414
      %p416 = pneg %p415
      // Predicated region
      $region61: #{multi_task_forward.1} parent=5 // pred_check
        _
      $region62: #{multi_task_forward.1} parent=5 // pred_check_branch
        %418 = sbr.rel (%p415) target = $region64
      $region63: #{multi_task_forward.1} parent=5 // pred_region
        %s419 = ssub.s32 %s23, 1
        %s420 = smul.u32 8, %s28
        %p421 = scmp.lt.s32.totalorder %s420, 15
        %s422 = scalar_select %p421, %s420, 15
        %s423 = smul.addr %s422, 4
        %s424 = scalar_lea.vmem %s0, %s423
        %p425 = pneg %p49
        %p426 = pneg %p46
        %p427 = scmp.lt.s32.totalorder %s28, 1
        %s428 = scalar_select %p427, %s28, 1
        %s429 = smul.addr %s428, 8
        %s430 = scalar_lea.vmem %s1, %s429
        %p431 = pneg %p75
        %p432 = pneg %p72
        %p433 = scmp.lt.s32.totalorder %s28, 1
        %s434 = scalar_select %p433, %s28, 1
        %s435 = smul.addr %s434, 8
        %s436 = scalar_lea.vmem %s2, %s435
        %p437 = pneg %p101
        %p438 = pneg %p98
        %p439 = pneg %p122
        %p440 = pneg %p119
        %p441 = pneg %p143
        %p442 = pneg %p140
        %p443 = pneg %p164
        %p444 = pneg %p161
        %p445 = pneg %p185
        %p446 = pneg %p182
        %p447 = pneg %p206
        %p448 = pneg %p203
        %p449 = pneg %p227
        %p450 = pneg %p224
        %p451 = pneg %p248
        %p452 = pneg %p245
        %p453 = pneg %p269
        %p454 = pneg %p266
        %p455 = pneg %p295
        %p456 = pneg %p292
        %s457 = smul.u32 8, %s28
        %p458 = scmp.lt.s32.totalorder %s457, 15
        %s459 = scalar_select %p458, %s457, 15
        %s460 = scalar_lea.vmem %s11, %s459
        %p461 = pneg %p321
        %p462 = pneg %p318
        %s463 = smul.u32 8, %s28
        %p464 = scmp.lt.s32.totalorder %s463, 15
        %s465 = scalar_select %p464, %s463, 15
        %s466 = smul.addr %s465, 8
        %s467 = scalar_lea.vmem %s12, %s466
        %p468 = pneg %p347
        %p469 = pneg %p344
        %s470 = sand.u32 %s334, 1
        %s471 = scalar_lea.sflag [#allocation3], %s470
        %s472 = sand.u32 %s334, 1
        %s473 = smul.addr %s472, 8
        %s474 = scalar_lea.vmem [#allocation2], %s473
        %s475 = smul.u32 8, %s28
        %p476 = scmp.lt.s32.totalorder %s475, 15
        %s477 = scalar_select %p476, %s475, 15
        %s478 = smul.addr %s477, 4
        %s479 = scalar_lea.vmem %s0, %s478
        %s480 = smul.u32 8, %s28
        %p481 = scmp.lt.s32.totalorder %s28, 1
        %s482 = scalar_select %p481, %s28, 1
        %s483 = smul.addr %s482, 8
        %s484 = scalar_lea.vmem %s1, %s483
        %p485 = scmp.lt.s32.totalorder %s28, 1
        %s486 = scalar_select %p485, %s28, 1
        %s487 = smul.addr %s486, 8
        %s488 = scalar_lea.vmem %s2, %s487
        %s489 = smul.u32 8, %s28
        %p490 = scmp.lt.s32.totalorder %s489, 15
        %s491 = scalar_select %p490, %s489, 15
        %s492 = scalar_lea.vmem %s11, %s491
        %s493 = smul.u32 8, %s28
        %s494 = smul.u32 8, %s28
        %p495 = scmp.lt.s32.totalorder %s494, 15
        %s496 = scalar_select %p495, %s494, 15
        %s497 = smul.addr %s496, 8
        %s498 = scalar_lea.vmem %s12, %s497
        %s499 = smul.u32 8, %s28
        %s500 = smul.u32 8, %s28
        %v502 = vld [vmem:[%s479] sm:$0xf]
        %v503 = vld [vmem:[%s479 + $0x4] sm:$0xf]
        %v504 = vld [vmem:[%s479 + $0x8] sm:$0xf]
        %v505 = vld [vmem:[%s479 + $0xc] sm:$0xf]
        %v506 = vld [vmem:[%s479 + $0x10] sm:$0xf]
        %v507 = vld [vmem:[%s479 + $0x14] sm:$0xf]
        %v508 = vld [vmem:[%s479 + $0x18] sm:$0xf]
        %v509 = vld [vmem:[%s479 + $0x1c] sm:$0xf]
        %v510 = vld [vmem:[%s484] sm:$0xff]
        %v511 = vld [vmem:[%s488] sm:$0xff]
        %v512 = vunpack.c.l.bf16 %v502
        %v513 = vunpack.c.l.bf16 %v503
        %v514 = vunpack.c.l.bf16 %v504
        %v515 = vunpack.c.l.bf16 %v505
        %v516 = vunpack.c.l.bf16 %v506
        %v517 = vunpack.c.l.bf16 %v507
        %v518 = vunpack.c.l.bf16 %v508
        %v519 = vunpack.c.l.bf16 %v509
        %v520 = vlaneseq
        %v521 = vshrl.u32 %v520, 7
        %v522 = vsub.s32 0, %v521
        %v523 = vrot.slane %v510, %v522
        %525 = vbcast.lane.b32.xlu0 %v523, 256
        %v526 = vpop.permute.xlu0 %525
        %v527 = vlaneseq
        %v528 = vshrl.u32 %v527, 7
        %v529 = vsub.s32 1, %v528
        %v530 = vrot.slane %v510, %v529
        %532 = vbcast.lane.b32.xlu0 %v530, 256
        %v533 = vpop.permute.xlu0 %532
        %v534 = vlaneseq
        %v535 = vshrl.u32 %v534, 7
        %v536 = vsub.s32 2, %v535
        %v537 = vrot.slane %v510, %v536
        %539 = vbcast.lane.b32.xlu0 %v537, 256
        %v540 = vpop.permute.xlu0 %539
        %v541 = vlaneseq
        %v542 = vshrl.u32 %v541, 7
        %v543 = vsub.s32 3, %v542
        %v544 = vrot.slane %v510, %v543
        %546 = vbcast.lane.b32.xlu0 %v544, 256
        %v547 = vpop.permute.xlu0 %546
        %v548 = vlaneseq
        %v549 = vshrl.u32 %v548, 7
        %v550 = vsub.s32 4, %v549
        %v551 = vrot.slane %v510, %v550
        %553 = vbcast.lane.b32.xlu0 %v551, 256
        %v554 = vpop.permute.xlu0 %553
        %v555 = vlaneseq
        %v556 = vshrl.u32 %v555, 7
        %v557 = vsub.s32 5, %v556
        %v558 = vrot.slane %v510, %v557
        %560 = vbcast.lane.b32.xlu0 %v558, 256
        %v561 = vpop.permute.xlu0 %560
        %v562 = vlaneseq
        %v563 = vshrl.u32 %v562, 7
        %v564 = vsub.s32 6, %v563
        %v565 = vrot.slane %v510, %v564
        %567 = vbcast.lane.b32.xlu0 %v565, 256
        %v568 = vpop.permute.xlu0 %567
        %v569 = vlaneseq
        %v570 = vshrl.u32 %v569, 7
        %v571 = vsub.s32 7, %v570
        %v572 = vrot.slane %v510, %v571
        %574 = vbcast.lane.b32.xlu0 %v572, 256
        %v575 = vpop.permute.xlu0 %574
        %v576 = vmul.f32 %v512, %v526
        %v577 = vmul.f32 %v513, %v533
        %v578 = vmul.f32 %v514, %v540
        %v579 = vmul.f32 %v515, %v547
        %v580 = vmul.f32 %v516, %v554
        %v581 = vmul.f32 %v517, %v561
        %v582 = vmul.f32 %v518, %v568
        %v583 = vmul.f32 %v519, %v575
        %vm584 = vcmask 261120
        %v585 = vsel %vm584, %v576, 0.0
        %v586 = vrot.slane %v585, 4
        %v587 = vadd.f32 %v585, %v586
        %v588 = vrot.slane %v587, 2
        %v589 = vadd.f32 %v587, %v588
        %v590 = vrot.slane %v589, 1
        %v591 = vadd.f32 %v589, %v590
        %v592 = vsel %vm584, %v577, 0.0
        %v593 = vrot.slane %v592, 4
        %v594 = vadd.f32 %v592, %v593
        %v595 = vrot.slane %v594, 2
        %v596 = vadd.f32 %v594, %v595
        %v597 = vrot.slane %v596, 1
        %v598 = vadd.f32 %v596, %v597
        %v599 = vsel %vm584, %v578, 0.0
        %v600 = vrot.slane %v599, 4
        %v601 = vadd.f32 %v599, %v600
        %v602 = vrot.slane %v601, 2
        %v603 = vadd.f32 %v601, %v602
        %v604 = vrot.slane %v603, 1
        %v605 = vadd.f32 %v603, %v604
        %v606 = vsel %vm584, %v579, 0.0
        %v607 = vrot.slane %v606, 4
        %v608 = vadd.f32 %v606, %v607
        %v609 = vrot.slane %v608, 2
        %v610 = vadd.f32 %v608, %v609
        %v611 = vrot.slane %v610, 1
        %v612 = vadd.f32 %v610, %v611
        %v613 = vsel %vm584, %v580, 0.0
        %v614 = vrot.slane %v613, 4
        %v615 = vadd.f32 %v613, %v614
        %v616 = vrot.slane %v615, 2
        %v617 = vadd.f32 %v615, %v616
        %v618 = vrot.slane %v617, 1
        %v619 = vadd.f32 %v617, %v618
        %v620 = vsel %vm584, %v581, 0.0
        %v621 = vrot.slane %v620, 4
        %v622 = vadd.f32 %v620, %v621
        %v623 = vrot.slane %v622, 2
        %v624 = vadd.f32 %v622, %v623
        %v625 = vrot.slane %v624, 1
        %v626 = vadd.f32 %v624, %v625
        %v627 = vsel %vm584, %v582, 0.0
        %v628 = vrot.slane %v627, 4
        %v629 = vadd.f32 %v627, %v628
        %v630 = vrot.slane %v629, 2
        %v631 = vadd.f32 %v629, %v630
        %v632 = vrot.slane %v631, 1
        %v633 = vadd.f32 %v631, %v632
        %v634 = vsel %vm584, %v583, 0.0
        %v635 = vrot.slane %v634, 4
        %v636 = vadd.f32 %v634, %v635
        %v637 = vrot.slane %v636, 2
        %v638 = vadd.f32 %v636, %v637
        %v639 = vrot.slane %v638, 1
        %v640 = vadd.f32 %v638, %v639
        %642 = vset.pattern.permute.xlu0 0
        %643 = vperm.xlu0 %642, %v511
        %v644 = vpop.permute.xlu0 %643
        %v645 = vrot.slane %v644, 1
        %v646 = vrot.slane %v644, 2
        %v647 = vrot.slane %v644, 3
        %v648 = vrot.slane %v644, 4
        %v649 = vrot.slane %v644, 5
        %v650 = vrot.slane %v644, 6
        %v651 = vrot.slane %v644, 7
        %v660 = vmul.f32 %v591, %v644
        %v661 = vmul.f32 %v598, %v645
        %v662 = vmul.f32 %v605, %v646
        %v663 = vmul.f32 %v612, %v647
        %v664 = vmul.f32 %v619, %v648
        %v665 = vmul.f32 %v626, %v649
        %v666 = vmul.f32 %v633, %v650
        %v667 = vmul.f32 %v640, %v651
        %vm668 = vcmask 253952
        %669 = vst.msk [vmem:[%s474] sm:$0x1] %vm668, %v660
        %670 = vst.msk [vmem:[%s474 + $0x1] sm:$0x1] %vm668, %v661
        %671 = vst.msk [vmem:[%s474 + $0x2] sm:$0x1] %vm668, %v662
        %672 = vst.msk [vmem:[%s474 + $0x3] sm:$0x1] %vm668, %v663
        %673 = vst.msk [vmem:[%s474 + $0x4] sm:$0x1] %vm668, %v664
        %674 = vst.msk [vmem:[%s474 + $0x5] sm:$0x1] %vm668, %v665
        %675 = vst.msk [vmem:[%s474 + $0x6] sm:$0x1] %vm668, %v666
        %676 = vst.msk [vmem:[%s474 + $0x7] sm:$0x1] %vm668, %v667
        %v677 = vpack.c.bf16 %v660, %v660
        %v678 = vpack.c.bf16 %v661, %v661
        %v679 = vpack.c.bf16 %v662, %v662
        %v680 = vpack.c.bf16 %v663, %v663
        %v681 = vpack.c.bf16 %v664, %v664
        %v682 = vpack.c.bf16 %v665, %v665
        %v683 = vpack.c.bf16 %v666, %v666
        %v684 = vpack.c.bf16 %v667, %v667
        %v685 = vld [vmem:[%s3] sm:$0xf]
        %v686 = vld [vmem:[%s3 + $0x4] sm:$0xf]
        %v687 = vld [vmem:[%s3 + $0x8] sm:$0xf]
        %v688 = vld [vmem:[%s3 + $0xc] sm:$0xf]
        %v689 = vld [vmem:[%s4] sm:$0x1]
        %v691 = vlaneseq
        %v692 = vshrl.u32 %v691, 7
        %v693 = vsub.s32 0, %v692
        %v694 = vrot.slane %v689, %v693
        %v704 = vunpack.c.l.b16 %v677
        %v705 = vunpack.c.l.b16 %v678
        %v706 = vunpack.c.l.b16 %v679
        %v707 = vunpack.c.l.b16 %v680
        %v708 = vunpack.c.l.b16 %v681
        %v709 = vunpack.c.l.b16 %v682
        %v710 = vunpack.c.l.b16 %v683
        %v711 = vunpack.c.l.b16 %v684
        %v712 = vrot.slane %v705, 7
        %vm713 = vcmask 1041409
        %v714 = vsel %vm713, %v712, %v704
        %v715 = vrot.slane %v706, 6
        %vm716 = vcmask 1042434
        %v717 = vsel %vm716, %v715, %v714
        %v718 = vrot.slane %v707, 5
        %vm719 = vcmask 1043459
        %v720 = vsel %vm719, %v718, %v717
        %v721 = vrot.slane %v708, 4
        %vm722 = vcmask 1044484
        %v723 = vsel %vm722, %v721, %v720
        %v724 = vrot.slane %v709, 3
        %vm725 = vcmask 1045509
        %v726 = vsel %vm725, %v724, %v723
        %v727 = vrot.slane %v710, 2
        %vm728 = vcmask 1046534
        %v729 = vsel %vm728, %v727, %v726
        %v730 = vrot.slane %v711, 1
        %vm731 = vcmask 1047559
        %v732 = vsel %vm731, %v730, %v729
        %v733 = vpack.c.b16 %v732, %v732
        %v738 = vunpack.c.l.b16 %v685
        %v739 = vunpack.c.l.b16 %v686
        %v740 = vunpack.c.l.b16 %v687
        %v741 = vunpack.c.l.b16 %v688
        %v742 = vpack.c.b16 %v739, %v738
        %v743 = vpack.c.b16 %v741, %v740
        %v747 = vsel %vm584, %v733, 0
        %749 = vmatprep.subr.bf16.mxu0 0
        %750 = vmatpush1.bf16.msra.mxu0 %v742
        %751 = vmatprep.subr.bf16.mxu0 0
        %752 = vmatpush1.bf16.msra.mxu0 %v743
        %753 = vmatprep.subr.bf16.mxu0 0
        %754 = vmatpush1.bf16.msra.mxu0 0
        %755 = vmatprep.subr.bf16.mxu0 0
        %756 = vmatpush1.bf16.msra.mxu0 0
        %757 = vmatprep.subr.bf16.mxu0 0
        %758 = vmatpush1.bf16.msra.mxu0 0
        %759 = vmatprep.subr.bf16.mxu0 0
        %760 = vmatpush1.bf16.msra.mxu0 0
        %761 = vmatprep.subr.bf16.mxu0 0
        %762 = vmatpush1.bf16.msra.mxu0 0
        %763 = vmatprep.subr.bf16.mxu0 0
        %764 = vmatpush1.bf16.msra.mxu0 0
        %765 = vmatprep.subr.bf16.mxu0 0
        %766 = vmatpush1.bf16.msra.mxu0 0
        %767 = vmatprep.subr.bf16.mxu0 0
        %768 = vmatpush1.bf16.msra.mxu0 0
        %769 = vmatprep.subr.bf16.mxu0 0
        %770 = vmatpush1.bf16.msra.mxu0 0
        %771 = vmatprep.subr.bf16.mxu0 0
        %772 = vmatpush1.bf16.msra.mxu0 0
        %773 = vmatprep.subr.bf16.mxu0 0
        %774 = vmatpush1.bf16.msra.mxu0 0
        %775 = vmatprep.subr.bf16.mxu0 0
        %776 = vmatpush1.bf16.msra.mxu0 0
        %777 = vmatprep.subr.bf16.mxu0 0
        %778 = vmatpush1.bf16.msra.mxu0 0
        %779 = vmatprep.subr.bf16.mxu0 0
        %780 = vmatpush1.bf16.msra.mxu0 0
        %781 = vmatprep.mubr.bf16.mxu0 0
        %782 = vmatmul.mubr.bf16.gmra.mrb[0].mxu0 %v747
        %v783 = vpop.f32.mrb[0].mxu0
        %v784 = vadd.f32 %v694, %v783
        %v785 = vpop.f32.mrb[0].mxu0
        %v786 = vpop.f32.mrb[0].mxu0
        %v787 = vpop.f32.mrb[0].mxu0
        %788 = vdwg.mxu0
        %v789 = vmax.f32 %v784, 0.0
        %v790 = vpack.c.bf16 %v789, %v789
        %v791 = vld [vmem:[%s5] sm:$0xf]
        %v792 = vld [vmem:[%s5 + $0x4] sm:$0xf]
        %v793 = vld [vmem:[%s5 + $0x8] sm:$0xf]
        %v794 = vld [vmem:[%s5 + $0xc] sm:$0xf]
        %v795 = vld [vmem:[%s5 + $0x10] sm:$0xf]
        %v796 = vld [vmem:[%s5 + $0x14] sm:$0xf]
        %v797 = vld [vmem:[%s5 + $0x18] sm:$0xf]
        %v798 = vld [vmem:[%s5 + $0x1c] sm:$0xf]
        %v799 = vld [vmem:[%s5 + $0x20] sm:$0xf]
        %v800 = vld [vmem:[%s5 + $0x24] sm:$0xf]
        %v801 = vld [vmem:[%s5 + $0x28] sm:$0xf]
        %v802 = vld [vmem:[%s5 + $0x2c] sm:$0xf]
        %v803 = vld [vmem:[%s5 + $0x30] sm:$0xf]
        %v804 = vld [vmem:[%s5 + $0x34] sm:$0xf]
        %v805 = vld [vmem:[%s5 + $0x38] sm:$0xf]
        %v806 = vld [vmem:[%s5 + $0x3c] sm:$0xf]
        %v807 = vld [vmem:[%s6] sm:$0x1]
        %v809 = vlaneseq
        %v810 = vshrl.u32 %v809, 7
        %v811 = vsub.s32 0, %v810
        %v812 = vrot.slane %v807, %v811
        %v830 = vunpack.c.l.b16 %v791
        %v831 = vunpack.c.l.b16 %v792
        %v832 = vunpack.c.l.b16 %v793
        %v833 = vunpack.c.l.b16 %v794
        %v834 = vunpack.c.l.b16 %v795
        %v835 = vunpack.c.l.b16 %v796
        %v836 = vunpack.c.l.b16 %v797
        %v837 = vunpack.c.l.b16 %v798
        %v838 = vunpack.c.l.b16 %v799
        %v839 = vunpack.c.l.b16 %v800
        %v840 = vunpack.c.l.b16 %v801
        %v841 = vunpack.c.l.b16 %v802
        %v842 = vunpack.c.l.b16 %v803
        %v843 = vunpack.c.l.b16 %v804
        %v844 = vunpack.c.l.b16 %v805
        %v845 = vunpack.c.l.b16 %v806
        %v846 = vpack.c.b16 %v831, %v830
        %v847 = vpack.c.b16 %v833, %v832
        %v848 = vpack.c.b16 %v835, %v834
        %v849 = vpack.c.b16 %v837, %v836
        %v850 = vpack.c.b16 %v839, %v838
        %v851 = vpack.c.b16 %v841, %v840
        %v852 = vpack.c.b16 %v843, %v842
        %v853 = vpack.c.b16 %v845, %v844
        %862 = vmatprep.subr.bf16.mxu0 0
        %863 = vmatpush1.bf16.msra.mxu0 %v846
        %864 = vmatprep.subr.bf16.mxu0 0
        %865 = vmatpush1.bf16.msra.mxu0 %v847
        %866 = vmatprep.subr.bf16.mxu0 0
        %867 = vmatpush1.bf16.msra.mxu0 %v848
        %868 = vmatprep.subr.bf16.mxu0 0
        %869 = vmatpush1.bf16.msra.mxu0 %v849
        %870 = vmatprep.subr.bf16.mxu0 0
        %871 = vmatpush1.bf16.msra.mxu0 %v850
        %872 = vmatprep.subr.bf16.mxu0 0
        %873 = vmatpush1.bf16.msra.mxu0 %v851
        %874 = vmatprep.subr.bf16.mxu0 0
        %875 = vmatpush1.bf16.msra.mxu0 %v852
        %876 = vmatprep.subr.bf16.mxu0 0
        %877 = vmatpush1.bf16.msra.mxu0 %v853
        %878 = vmatprep.subr.bf16.mxu0 0
        %879 = vmatpush1.bf16.msra.mxu0 0
        %880 = vmatprep.subr.bf16.mxu0 0
        %881 = vmatpush1.bf16.msra.mxu0 0
        %882 = vmatprep.subr.bf16.mxu0 0
        %883 = vmatpush1.bf16.msra.mxu0 0
        %884 = vmatprep.subr.bf16.mxu0 0
        %885 = vmatpush1.bf16.msra.mxu0 0
        %886 = vmatprep.subr.bf16.mxu0 0
        %887 = vmatpush1.bf16.msra.mxu0 0
        %888 = vmatprep.subr.bf16.mxu0 0
        %889 = vmatpush1.bf16.msra.mxu0 0
        %890 = vmatprep.subr.bf16.mxu0 0
        %891 = vmatpush1.bf16.msra.mxu0 0
        %892 = vmatprep.subr.bf16.mxu0 0
        %893 = vmatpush1.bf16.msra.mxu0 0
        %894 = vmatprep.mubr.bf16.mxu0 0
        %895 = vmatmul.mubr.bf16.gmra.mrb[0].mxu0 %v790
        %v896 = vpop.f32.mrb[0].mxu0
        %v897 = vadd.f32 %v812, %v896
        %v898 = vpop.f32.mrb[0].mxu0
        %v899 = vpop.f32.mrb[0].mxu0
        %v900 = vpop.f32.mrb[0].mxu0
        %901 = vdwg.mxu0
        %v903 = vcombine.high %v897, %v897
        %v905 = vunpack.c.l.s4 1966171168
        %v906 = vunpack.c.0.s8 %v905
        %v907 = vlaneseq
        %v908 = vshrl.u32 %v907, 7
        %v909 = vsub.s32 %v906, %v908
        %v910 = vrot.slane %v897, %v909
        %v912 = vunpack.c.l.s4 1966171168
        %v913 = vunpack.c.0.s8 %v912
        %v914 = vlaneseq
        %v915 = vshrl.u32 %v914, 7
        %v916 = vsub.s32 %v913, %v915
        %v917 = vrot.slane %v903, %v916
        %v918 = vcombine.high %v910, %v910
        %v919 = vcombine.high %v917, %v917
        %v921 = vunpack.c.l.s4 1966171168
        %v922 = vunpack.c.0.s8 %v921
        %v923 = vlaneseq
        %v924 = vshrl.u32 %v923, 7
        %v925 = vsub.s32 %v922, %v924
        %v926 = vrot.slane %v910, %v925
        %v928 = vunpack.c.l.s4 1966171168
        %v929 = vunpack.c.0.s8 %v928
        %v930 = vlaneseq
        %v931 = vshrl.u32 %v930, 7
        %v932 = vsub.s32 %v929, %v931
        %v933 = vrot.slane %v917, %v932
        %v935 = vunpack.c.l.s4 1966171168
        %v936 = vunpack.c.0.s8 %v935
        %v937 = vlaneseq
        %v938 = vshrl.u32 %v937, 7
        %v939 = vsub.s32 %v936, %v938
        %v940 = vrot.slane %v918, %v939
        %v942 = vunpack.c.l.s4 1966171168
        %v943 = vunpack.c.0.s8 %v942
        %v944 = vlaneseq
        %v945 = vshrl.u32 %v944, 7
        %v946 = vsub.s32 %v943, %v945
        %v947 = vrot.slane %v919, %v946
        %v948 = vcombine.high %v926, %v926
        %v949 = vcombine.high %v933, %v933
        %v950 = vcombine.high %v940, %v940
        %v951 = vcombine.high %v947, %v947
        %vm960 = vcmask 16384
        %961 = vst.msk [vmem:[%s492] sm:$0x1] %vm960, %v926
        %962 = vst.msk [vmem:[%s492 + $0x1] sm:$0x1] %vm960, %v940
        %963 = vst.msk [vmem:[%s492 + $0x2] sm:$0x1] %vm960, %v948
        %964 = vst.msk [vmem:[%s492 + $0x3] sm:$0x1] %vm960, %v950
        %965 = vst.msk [vmem:[%s492 + $0x4] sm:$0x1] %vm960, %v933
        %966 = vst.msk [vmem:[%s492 + $0x5] sm:$0x1] %vm960, %v947
        %967 = vst.msk [vmem:[%s492 + $0x6] sm:$0x1] %vm960, %v949
        %968 = vst.msk [vmem:[%s492 + $0x7] sm:$0x1] %vm960, %v951
        %v969 = vld [vmem:[%s7] sm:$0xf]
        %v970 = vld [vmem:[%s7 + $0x4] sm:$0xf]
        %v971 = vld [vmem:[%s7 + $0x8] sm:$0xf]
        %v972 = vld [vmem:[%s7 + $0xc] sm:$0xf]
        %v973 = vld [vmem:[%s8] sm:$0x1]
        %v975 = vlaneseq
        %v976 = vshrl.u32 %v975, 7
        %v977 = vsub.s32 0, %v976
        %v978 = vrot.slane %v973, %v977
        %v988 = vunpack.c.l.b16 %v502
        %v989 = vunpack.c.l.b16 %v503
        %v990 = vunpack.c.l.b16 %v504
        %v991 = vunpack.c.l.b16 %v505
        %v992 = vunpack.c.l.b16 %v506
        %v993 = vunpack.c.l.b16 %v507
        %v994 = vunpack.c.l.b16 %v508
        %v995 = vunpack.c.l.b16 %v509
        %v996 = vpack.c.b16 %v989, %v988
        %v997 = vpack.c.b16 %v991, %v990
        %v998 = vpack.c.b16 %v993, %v992
        %v999 = vpack.c.b16 %v995, %v994
        %v1004 = vunpack.c.l.b16 %v969
        %v1005 = vunpack.c.l.b16 %v970
        %v1006 = vunpack.c.l.b16 %v971
        %v1007 = vunpack.c.l.b16 %v972
        %v1008 = vpack.c.b16 %v1005, %v1004
        %v1009 = vpack.c.b16 %v1007, %v1006
        %v1013 = vsel %vm584, %v996, 0
        %v1016 = vsel %vm584, %v997, 0
        %v1019 = vsel %vm584, %v998, 0
        %v1022 = vsel %vm584, %v999, 0
        %1024 = vmatprep.subr.bf16.mxu0 0
        %1025 = vmatpush1.bf16.msra.mxu0 %v1008
        %1026 = vmatprep.subr.bf16.mxu0 0
        %1027 = vmatpush1.bf16.msra.mxu0 %v1009
        %1028 = vmatprep.subr.bf16.mxu0 0
        %1029 = vmatpush1.bf16.msra.mxu0 0
        %1030 = vmatprep.subr.bf16.mxu0 0
        %1031 = vmatpush1.bf16.msra.mxu0 0
        %1032 = vmatprep.subr.bf16.mxu0 0
        %1033 = vmatpush1.bf16.msra.mxu0 0
        %1034 = vmatprep.subr.bf16.mxu0 0
        %1035 = vmatpush1.bf16.msra.mxu0 0
        %1036 = vmatprep.subr.bf16.mxu0 0
        %1037 = vmatpush1.bf16.msra.mxu0 0
        %1038 = vmatprep.subr.bf16.mxu0 0
        %1039 = vmatpush1.bf16.msra.mxu0 0
        %1040 = vmatprep.subr.bf16.mxu0 0
        %1041 = vmatpush1.bf16.msra.mxu0 0
        %1042 = vmatprep.subr.bf16.mxu0 0
        %1043 = vmatpush1.bf16.msra.mxu0 0
        %1044 = vmatprep.subr.bf16.mxu0 0
        %1045 = vmatpush1.bf16.msra.mxu0 0
        %1046 = vmatprep.subr.bf16.mxu0 0
        %1047 = vmatpush1.bf16.msra.mxu0 0
        %1048 = vmatprep.subr.bf16.mxu0 0
        %1049 = vmatpush1.bf16.msra.mxu0 0
        %1050 = vmatprep.subr.bf16.mxu0 0
        %1051 = vmatpush1.bf16.msra.mxu0 0
        %1052 = vmatprep.subr.bf16.mxu0 0
        %1053 = vmatpush1.bf16.msra.mxu0 0
        %1054 = vmatprep.subr.bf16.mxu0 0
        %1055 = vmatpush1.bf16.msra.mxu0 0
        %1056 = vmatprep.mubr.bf16.mxu0 0
        %1057 = vmatmul.mubr.bf16.gmra.mrb[0].mxu0 %v1013
        %v1058 = vpop.f32.mrb[0].mxu0
        %v1059 = vadd.f32 %v978, %v1058
        %v1060 = vpop.f32.mrb[0].mxu0
        %v1061 = vpop.f32.mrb[0].mxu0
        %v1062 = vadd.f32 %v978, %v1061
        %v1063 = vpop.f32.mrb[0].mxu0
        %1064 = vmatprep.mubr.bf16.mxu0 0
        %1065 = vmatmul.mubr.bf16.gmra.mrb[0].mxu0 %v1016
        %v1066 = vpop.f32.mrb[0].mxu0
        %v1067 = vadd.f32 %v978, %v1066
        %v1068 = vpop.f32.mrb[0].mxu0
        %v1069 = vpop.f32.mrb[0].mxu0
        %v1070 = vadd.f32 %v978, %v1069
        %v1071 = vpop.f32.mrb[0].mxu0
        %1072 = vmatprep.mubr.bf16.mxu0 0
        %1073 = vmatmul.mubr.bf16.gmra.mrb[0].mxu0 %v1019
        %v1074 = vpop.f32.mrb[0].mxu0
        %v1075 = vadd.f32 %v978, %v1074
        %v1076 = vpop.f32.mrb[0].mxu0
        %v1077 = vpop.f32.mrb[0].mxu0
        %v1078 = vadd.f32 %v978, %v1077
        %v1079 = vpop.f32.mrb[0].mxu0
        %1080 = vmatprep.mubr.bf16.mxu0 0
        %1081 = vmatmul.mubr.bf16.gmra.mrb[0].mxu0 %v1022
        %v1082 = vpop.f32.mrb[0].mxu0
        %v1083 = vadd.f32 %v978, %v1082
        %v1084 = vpop.f32.mrb[0].mxu0
        %v1085 = vpop.f32.mrb[0].mxu0
        %v1086 = vadd.f32 %v978, %v1085
        %v1087 = vpop.f32.mrb[0].mxu0
        %1088 = vdwg.mxu0
        %v1089 = vmax.f32 %v1059, 0.0
        %v1090 = vmax.f32 %v1062, 0.0
        %v1091 = vmax.f32 %v1067, 0.0
        %v1092 = vmax.f32 %v1070, 0.0
        %v1093 = vmax.f32 %v1075, 0.0
        %v1094 = vmax.f32 %v1078, 0.0
        %v1095 = vmax.f32 %v1083, 0.0
        %v1096 = vmax.f32 %v1086, 0.0
        %v1097 = vpack.c.bf16 %v1090, %v1089
        %v1098 = vpack.c.bf16 %v1092, %v1091
        %v1099 = vpack.c.bf16 %v1094, %v1093
        %v1100 = vpack.c.bf16 %v1096, %v1095
        %v1101 = vld [vmem:[%s9] sm:$0xf]
        %v1102 = vld [vmem:[%s9 + $0x4] sm:$0xf]
        %v1103 = vld [vmem:[%s9 + $0x8] sm:$0xf]
        %v1104 = vld [vmem:[%s9 + $0xc] sm:$0xf]
        %v1105 = vld [vmem:[%s9 + $0x10] sm:$0xf]
        %v1106 = vld [vmem:[%s9 + $0x14] sm:$0xf]
        %v1107 = vld [vmem:[%s9 + $0x18] sm:$0xf]
        %v1108 = vld [vmem:[%s9 + $0x1c] sm:$0xf]
        %v1109 = vld [vmem:[%s9 + $0x20] sm:$0xf]
        %v1110 = vld [vmem:[%s9 + $0x24] sm:$0xf]
        %v1111 = vld [vmem:[%s9 + $0x28] sm:$0xf]
        %v1112 = vld [vmem:[%s9 + $0x2c] sm:$0xf]
        %v1113 = vld [vmem:[%s9 + $0x30] sm:$0xf]
        %v1114 = vld [vmem:[%s9 + $0x34] sm:$0xf]
        %v1115 = vld [vmem:[%s9 + $0x38] sm:$0xf]
        %v1116 = vld [vmem:[%s9 + $0x3c] sm:$0xf]
        %v1117 = vld [vmem:[%s10] sm:$0x1]
        %v1119 = vlaneseq
        %v1120 = vshrl.u32 %v1119, 7
        %v1121 = vsub.s32 0, %v1120
        %v1122 = vrot.slane %v1117, %v1121
        %v1140 = vunpack.c.l.b16 %v1101
        %v1141 = vunpack.c.l.b16 %v1102
        %v1142 = vunpack.c.l.b16 %v1103
        %v1143 = vunpack.c.l.b16 %v1104
        %v1144 = vunpack.c.l.b16 %v1105
        %v1145 = vunpack.c.l.b16 %v1106
        %v1146 = vunpack.c.l.b16 %v1107
        %v1147 = vunpack.c.l.b16 %v1108
        %v1148 = vunpack.c.l.b16 %v1109
        %v1149 = vunpack.c.l.b16 %v1110
        %v1150 = vunpack.c.l.b16 %v1111
        %v1151 = vunpack.c.l.b16 %v1112
        %v1152 = vunpack.c.l.b16 %v1113
        %v1153 = vunpack.c.l.b16 %v1114
        %v1154 = vunpack.c.l.b16 %v1115
        %v1155 = vunpack.c.l.b16 %v1116
        %v1156 = vpack.c.b16 %v1141, %v1140
        %v1157 = vpack.c.b16 %v1143, %v1142
        %v1158 = vpack.c.b16 %v1145, %v1144
        %v1159 = vpack.c.b16 %v1147, %v1146
        %v1160 = vpack.c.b16 %v1149, %v1148
        %v1161 = vpack.c.b16 %v1151, %v1150
        %v1162 = vpack.c.b16 %v1153, %v1152
        %v1163 = vpack.c.b16 %v1155, %v1154
        %1172 = vmatprep.subr.bf16.mxu0 0
        %1173 = vmatpush1.bf16.msra.mxu0 %v1156
        %1174 = vmatprep.subr.bf16.mxu0 0
        %1175 = vmatpush1.bf16.msra.mxu0 %v1157
        %1176 = vmatprep.subr.bf16.mxu0 0
        %1177 = vmatpush1.bf16.msra.mxu0 %v1158
        %1178 = vmatprep.subr.bf16.mxu0 0
        %1179 = vmatpush1.bf16.msra.mxu0 %v1159
        %1180 = vmatprep.subr.bf16.mxu0 0
        %1181 = vmatpush1.bf16.msra.mxu0 %v1160
        %1182 = vmatprep.subr.bf16.mxu0 0
        %1183 = vmatpush1.bf16.msra.mxu0 %v1161
        %1184 = vmatprep.subr.bf16.mxu0 0
        %1185 = vmatpush1.bf16.msra.mxu0 %v1162
        %1186 = vmatprep.subr.bf16.mxu0 0
        %1187 = vmatpush1.bf16.msra.mxu0 %v1163
        %1188 = vmatprep.subr.bf16.mxu0 0
        %1189 = vmatpush1.bf16.msra.mxu0 0
        %1190 = vmatprep.subr.bf16.mxu0 0
        %1191 = vmatpush1.bf16.msra.mxu0 0
        %1192 = vmatprep.subr.bf16.mxu0 0
        %1193 = vmatpush1.bf16.msra.mxu0 0
        %1194 = vmatprep.subr.bf16.mxu0 0
        %1195 = vmatpush1.bf16.msra.mxu0 0
        %1196 = vmatprep.subr.bf16.mxu0 0
        %1197 = vmatpush1.bf16.msra.mxu0 0
        %1198 = vmatprep.subr.bf16.mxu0 0
        %1199 = vmatpush1.bf16.msra.mxu0 0
        %1200 = vmatprep.subr.bf16.mxu0 0
        %1201 = vmatpush1.bf16.msra.mxu0 0
        %1202 = vmatprep.subr.bf16.mxu0 0
        %1203 = vmatpush1.bf16.msra.mxu0 0
        %1204 = vmatprep.mubr.bf16.mxu0 0
        %1205 = vmatmul.mubr.bf16.gmra.mrb[0].mxu0 %v1097
        %v1206 = vpop.f32.mrb[0].mxu0
        %v1207 = vadd.f32 %v1122, %v1206
        %v1208 = vpop.f32.mrb[0].mxu0
        %v1209 = vpop.f32.mrb[0].mxu0
        %v1210 = vadd.f32 %v1122, %v1209
        %v1211 = vpop.f32.mrb[0].mxu0
        %1212 = vmatprep.mubr.bf16.mxu0 0
        %1213 = vmatmul.mubr.bf16.gmra.mrb[0].mxu0 %v1098
        %v1214 = vpop.f32.mrb[0].mxu0
        %v1215 = vadd.f32 %v1122, %v1214
        %v1216 = vpop.f32.mrb[0].mxu0
        %v1217 = vpop.f32.mrb[0].mxu0
        %v1218 = vadd.f32 %v1122, %v1217
        %v1219 = vpop.f32.mrb[0].mxu0
        %1220 = vmatprep.mubr.bf16.mxu0 0
        %1221 = vmatmul.mubr.bf16.gmra.mrb[0].mxu0 %v1099
        %v1222 = vpop.f32.mrb[0].mxu0
        %v1223 = vadd.f32 %v1122, %v1222
        %v1224 = vpop.f32.mrb[0].mxu0
        %v1225 = vpop.f32.mrb[0].mxu0
        %v1226 = vadd.f32 %v1122, %v1225
        %v1227 = vpop.f32.mrb[0].mxu0
        %1228 = vmatprep.mubr.bf16.mxu0 0
        %1229 = vmatmul.mubr.bf16.gmra.mrb[0].mxu0 %v1100
        %v1230 = vpop.f32.mrb[0].mxu0
        %v1231 = vadd.f32 %v1122, %v1230
        %v1232 = vpop.f32.mrb[0].mxu0
        %v1233 = vpop.f32.mrb[0].mxu0
        %v1234 = vadd.f32 %v1122, %v1233
        %v1235 = vpop.f32.mrb[0].mxu0
        %1236 = vdwg.mxu0
        %vm1237 = vcmask 39936
        %1238 = vst.msk [vmem:[%s498] sm:$0xff] %vm1237, %v1207
        %1239 = vst.msk [vmem:[%s498 + $0x8] sm:$0xff] %vm1237, %v1210
        %1240 = vst.msk [vmem:[%s498 + $0x10] sm:$0xff] %vm1237, %v1215
        %1241 = vst.msk [vmem:[%s498 + $0x18] sm:$0xff] %vm1237, %v1218
        %1242 = vst.msk [vmem:[%s498 + $0x20] sm:$0xff] %vm1237, %v1223
        %1243 = vst.msk [vmem:[%s498 + $0x28] sm:$0xff] %vm1237, %v1226
        %1244 = vst.msk [vmem:[%s498 + $0x30] sm:$0xff] %vm1237, %v1231
        %1245 = vst.msk [vmem:[%s498 + $0x38] sm:$0xff] %vm1237, %v1234
        %s1246 = smul.u32 8, %s28
        %p1247 = scmp.lt.s32.totalorder %s1246, 15
        %s1248 = scalar_select %p1247, %s1246, 15
        %s1249 = scalar_lea.vmem %s11, %s1248
        %s1250 = smul.u32 8, %s28
        %p1251 = scmp.lt.s32.totalorder %s1250, 15
        %s1252 = scalar_select %p1251, %s1250, 15
        %s1253 = smul.addr %s1252, 8
        %s1254 = scalar_lea.vmem %s12, %s1253
        %s1255 = sand.u32 %s334, 1
        %s1256 = scalar_lea.sflag [#allocation3], %s1255
        %s1257 = sand.u32 %s334, 1
        %s1258 = smul.addr %s1257, 8
        %s1259 = scalar_lea.vmem [#allocation2], %s1258
        // Predicated region
        $region65: #{multi_task_forward.1} parent=63 // pred_check
          %p1260 = pneg %p292
        $region66: #{multi_task_forward.1} parent=63 // pred_check_branch
          %1262 = sbr.rel (%p1260) target = $region68
        $region67: #{multi_task_forward.1} parent=63 // pred_region
          %s1263 = smul.u32 8, %s28
        $region68: #{multi_task_forward.1} parent=63 // pred_fallthru
          _
        // Predicated region
        $region69: #{multi_task_forward.1} parent=63 // pred_check
          %p1264 = pneg %p318
        $region70: #{multi_task_forward.1} parent=63 // pred_check_branch
          %1266 = sbr.rel (%p1264) target = $region72
        $region71: #{multi_task_forward.1} parent=63 // pred_region
          %s1267 = smul.u32 8, %s28
        $region72: #{multi_task_forward.1} parent=63 // pred_fallthru
          _
        // Predicated region
        $region73: #{multi_task_forward.1} parent=63 // pred_check
          %p1268 = pneg %p344
        $region74: #{multi_task_forward.1} parent=63 // pred_check_branch
          %1270 = sbr.rel (%p1268) target = $region76
        $region75: #{multi_task_forward.1} parent=63 // pred_region
          %s1271 = smul.u32 8, %s28
          %s1273 = ssub.s32 128, 128
          %1274 = vsyncadd %s1256, %s1273
          %s1275 = smul.addr %s1271, 16
          %s1276 = scalar_lea.hbm %s13, %s1275
          %s1277 = sshll.u32 %s1259, 4
          %s1278 = int_to_ptr.vmem [resolvable:$true] %s1277
          %1283 = dma.vmem_to_hbm [thread:$0]  %s1278, 128, %s1276, %s1256, 16, 16, 1
        $region76: #{multi_task_forward.1} parent=63 // pred_fallthru
          _
      $region64: #{multi_task_forward.1} parent=5 // pred_fallthru
        _
      %p1284 = scmp.le.s32.totalorder 2, %s23
      // Predicated region
      $region77: #{multi_task_forward.1} parent=5 // pred_check
        %p1285 = pneg %p1284
      $region78: #{multi_task_forward.1} parent=5 // pred_check_branch
        %1287 = sbr.rel (%p1285) target = $region80
      $region79: #{multi_task_forward.1} parent=5 // pred_region
        %s1288 = ssub.s32 %s23, 2
        // Predicated region
        $region81: #{multi_task_forward.1} parent=79 // pred_check
          %p1289 = pneg %p298
        $region82: #{multi_task_forward.1} parent=79 // pred_check_branch
          %1291 = sbr.rel (%p1289) target = $region84
        $region83: #{multi_task_forward.1} parent=79 // pred_region
          %s1292 = smul.u32 8, %s29
          %p1293 = scmp.lt.s32.totalorder %s1292, 15
          %s1294 = scalar_select %p1293, %s1292, 15
          %s1295 = scalar_lea.vmem %s11, %s1294
        $region84: #{multi_task_forward.1} parent=79 // pred_fallthru
          _
        // Predicated region
        $region85: #{multi_task_forward.1} parent=79 // pred_check
          %p1296 = pneg %p324
        $region86: #{multi_task_forward.1} parent=79 // pred_check_branch
          %1298 = sbr.rel (%p1296) target = $region88
        $region87: #{multi_task_forward.1} parent=79 // pred_region
          %s1299 = smul.u32 8, %s29
          %p1300 = scmp.lt.s32.totalorder %s1299, 15
          %s1301 = scalar_select %p1300, %s1299, 15
          %s1302 = smul.addr %s1301, 8
          %s1303 = scalar_lea.vmem %s12, %s1302
        $region88: #{multi_task_forward.1} parent=79 // pred_fallthru
          _
        // Predicated region
        $region89: #{multi_task_forward.1} parent=79 // pred_check
          %p1304 = pneg %p350
        $region90: #{multi_task_forward.1} parent=79 // pred_check_branch
          %1306 = sbr.rel (%p1304) target = $region92
        $region91: #{multi_task_forward.1} parent=79 // pred_region
          %s1307 = sand.u32 %s335, 1
          %s1308 = scalar_lea.sflag [#allocation3], %s1307
          %s1309 = sand.u32 %s335, 1
          %s1310 = smul.addr %s1309, 8
          %s1311 = scalar_lea.vmem [#allocation2], %s1310
          %1312 = dma.done %s1308, 128
        $region92: #{multi_task_forward.1} parent=79 // pred_fallthru
          _
      $region80: #{multi_task_forward.1} parent=5 // pred_fallthru
        _
    $region6: #{multi_task_forward.1} parent=1 // loop_footer
      %s27 = sadd.s32 1, %s23
    $region7: #{multi_task_forward.1} parent=1 // loop_footer_branch
      %22 = sbr.rel target = $region3
    $region8: #{multi_task_forward.1} parent=1 // loop_exit
      _
    %1313 = vsyncpa [#allocation3], 1
    %s1314 = scalar_lea.sflag [#allocation3], 1
    %1315 = vsyncpa %s1314, 1

</llo_original>
